<compile_context>
chip_gen: v6e
topology: v6e:2x2x1
jax: 0.10.0
libtpu: 0.0.40
codegen_flags: <defaults>
</compile_context>

<pallas_src>
import jax
import jax.numpy as jnp
from jax.experimental import pallas as pl
from jax.experimental.pallas import tpu as pltpu


def _deep_svdd_kernel(x_ref, w1_ref, b1_ref, w2_ref, b2_ref, out_ref):
    # x:  [TM, PACK*d_in]      (compute dtype, e.g. bf16)
    # w1: [PACK*d_in, PACK*H]  (compute dtype), block-diagonal
    # b1: [1, PACK*H]  f32
    # w2: [PACK*H, PACK*L] f32, block-diagonal
    # b2: [1, PACK*L]  f32
    h = jnp.dot(x_ref[...], w1_ref[...], preferred_element_type=jnp.float32)
    h = jnp.maximum(h + b1_ref[...], 0.0)                      # f32 activations
    y = jnp.dot(h, w2_ref[...], preferred_element_type=jnp.float32) + b2_ref[...]
    out_ref[...] = y.astype(out_ref.dtype)


def _round_up(n, m):
    return (n + m - 1) // m * m


def deep_svdd_forward(x, w1, b1, w2, b2, *,
                      pack=None,
                      block_rows_packed=2048,
                      compute_dtype=jnp.bfloat16):
    """DeepSVDD net forward pass on TPU via Pallas.

    x:  [B, input_dim] float32
    w1: [input_dim, 32], b1: [32]
    w2: [32, latent_dim], b2: [latent_dim]
    returns [B, latent_dim] float32

    pack:              rows packed per lane row (default 128 // input_dim).
    block_rows_packed: batch tile in PACKED rows (multiple of 8).
    compute_dtype:     bf16 (default; x/W1 only) or f32 (exact parity).
    """
    B, d_in = x.shape
    hidden = w1.shape[1]
    latent = w2.shape[1]

    if pack is None:
        pack = max(1, 128 // d_in) if d_in <= 128 else 1

    # ---- cheap padding: only to a multiple of pack*8 (<= pack*8 - 1 rows) ----
    row_align = pack * 8
    padded_b = _round_up(B, row_align)
    if padded_b != B:
        x = jnp.pad(x, ((0, padded_b - B), (0, 0)))
    bp = padded_b // pack                     # packed rows, multiple of 8

    # ---- pack rows into lanes (free, contiguous reshape) ----
    x_packed = x.reshape(bp, pack * d_in)
    if x_packed.dtype != compute_dtype:
        x_packed = x_packed.astype(compute_dtype)

    # ---- block-diagonal weights (tiny, built once) ----
    eye = jnp.eye(pack, dtype=jnp.float32)
    w1_big = jnp.kron(eye, w1.astype(jnp.float32)).astype(compute_dtype)
    w2_big = jnp.kron(eye, w2.astype(jnp.float32))               # stays f32
    b1_big = jnp.tile(b1.astype(jnp.float32), pack).reshape(1, pack * hidden)
    b2_big = jnp.tile(b2.astype(jnp.float32), pack).reshape(1, pack * latent)

    # ---- batch tile (packed rows): big enough to amortize per-step overhead,
    #      capped so there are >= 4 grid steps when the batch allows ----
    tm_cap = _round_up(pl.cdiv(bp, 4), 8)
    tm = min(_round_up(block_rows_packed, 8), tm_cap, bp)
    tm = max(tm, 8)
    num_blocks = pl.cdiv(bp, tm)              # ragged final block is fine

    out = pl.pallas_call(
        _deep_svdd_kernel,
        out_shape=jax.ShapeDtypeStruct((bp, pack * latent), jnp.float32),
        grid=(num_blocks,),
        in_specs=[
            # x: tiled over packed batch -> automatic double-buffered pipeline.
            pl.BlockSpec((tm, pack * d_in), lambda i: (i, 0)),
            # Weights / biases: constant index map -> DMA'd once, stay resident.
            pl.BlockSpec((pack * d_in, pack * hidden), lambda i: (0, 0)),
            pl.BlockSpec((1, pack * hidden), lambda i: (0, 0)),
            pl.BlockSpec((pack * hidden, pack * latent), lambda i: (0, 0)),
            pl.BlockSpec((1, pack * latent), lambda i: (0, 0)),
        ],
        out_specs=pl.BlockSpec((tm, pack * latent), lambda i: (i, 0)),
        compiler_params=pltpu.CompilerParams(
            # Batch steps are independent -> shard across v7x's 2 TensorCores.
            dimension_semantics=("parallel",),
        ),
    )(x_packed, w1_big, b1_big, w2_big, b2_big)

    # ---- unpack (free reshape) and drop padded rows ----
    return out.reshape(padded_b, latent)[:B]


def deep_svdd_apply(x, w1, b1, w2, b2, *, pallas_min_batch=1024, **kw):
    """Call-site policy: at tiny batches the pallas_call is pure launch
    overhead; plain XLA fuses this MLP into a couple of ops and is faster."""
    if x.shape[0] < pallas_min_batch:
        return jnp.maximum(x @ w1 + b1, 0.0) @ w2 + b2
    return deep_svdd_forward(x, w1, b1, w2, b2, **kw)


def init_params(key, input_dim, latent_dim=5, hidden=32):
    """Deterministic init mimicking PyTorch nn.Linear defaults
    (uniform(-1/sqrt(fan_in), 1/sqrt(fan_in)))."""
    k1, k2, k3, k4 = jax.random.split(key, 4)
    bnd1 = 1.0 / jnp.sqrt(jnp.float32(input_dim))
    bnd2 = 1.0 / jnp.sqrt(jnp.float32(hidden))
    w1 = jax.random.uniform(k1, (input_dim, hidden), jnp.float32, -bnd1, bnd1)
    b1 = jax.random.uniform(k2, (hidden,), jnp.float32, -bnd1, bnd1)
    w2 = jax.random.uniform(k3, (hidden, latent_dim), jnp.float32, -bnd2, bnd2)
    b2 = jax.random.uniform(k4, (latent_dim,), jnp.float32, -bnd2, bnd2)
    return w1, b1, w2, b2


if __name__ == "__main__":
    key = jax.random.PRNGKey(0)
    kx1, kx2, kp = jax.random.split(key, 3)

    input_dim = 16   # tabular feature count (X_drop minus 'label')
    latent_dim = 5
    hidden = 32
    w1, b1, w2, b2 = init_params(kp, input_dim, latent_dim, hidden)

    def ref_fwd(x):
        return jnp.maximum(x @ w1 + b1, 0.0) @ w2 + b2

    # --- Check 1: small aligned batch, exact f32 path (single grid step). ----
    x_small = jax.random.normal(kx1, (64, input_dim), dtype=jnp.float32)
    y_small = jax.block_until_ready(
        deep_svdd_forward(x_small, w1, b1, w2, b2, compute_dtype=jnp.float32))
    assert y_small.shape == (64, latent_dim)
    assert jnp.allclose(y_small, ref_fwd(x_small), atol=1e-5, rtol=1e-5)

    # --- Check 2: non-aligned batch with a small packed tile so row packing,
    # cheap padding and the ragged multi-step grid are all exercised (exact). --
    x_big = jax.random.normal(kx2, (300, input_dim), dtype=jnp.float32)
    y_big = jax.block_until_ready(
        deep_svdd_forward(x_big, w1, b1, w2, b2,
                          block_rows_packed=16, compute_dtype=jnp.float32))
    assert y_big.shape == (300, latent_dim)
    assert jnp.allclose(y_big, ref_fwd(x_big), atol=1e-5, rtol=1e-5)

    # --- Check 3: default bf16 path (x/W1 bf16; h, W2, biases, accum f32). ---
    y_bf16 = jax.block_until_ready(
        deep_svdd_forward(x_big, w1, b1, w2, b2, block_rows_packed=16))
    assert jnp.allclose(y_bf16, ref_fwd(x_big), atol=5e-2, rtol=5e-2)

    print("KERNEL_OK")
</pallas_src>

<mosaic_0001>
module attributes {stable_mosaic.version = 11 : i64} {
  func.func @_deep_svdd_kernel(%arg0: i32, %arg1: memref<8x128xf32, #tpu.memory_space<vmem>>, %arg2: memref<128x256xf32, #tpu.memory_space<vmem>>, %arg3: memref<1x256xf32, #tpu.memory_space<vmem>>, %arg4: memref<256x40xf32, #tpu.memory_space<vmem>>, %arg5: memref<1x40xf32, #tpu.memory_space<vmem>>, %arg6: memref<8x40xf32, #tpu.memory_space<vmem>>) attributes {dimension_semantics = [#tpu.dimension_semantics<parallel>], iteration_bounds = array<i64: 1>, scalar_prefetch = 0 : i64, scratch_operands = 0 : i64, tpu.core_type = #tpu.core_type<tc>, window_params = [{transform_indices = @transform_0, window_bounds = array<i64: 8, 128>}, {pipeline_mode = #tpu.pipeline_mode<synchronous>, transform_indices = @transform_1, window_bounds = array<i64: 128, 256>}, {pipeline_mode = #tpu.pipeline_mode<synchronous>, transform_indices = @transform_2, window_bounds = array<i64: 1, 256>}, {pipeline_mode = #tpu.pipeline_mode<synchronous>, transform_indices = @transform_3, window_bounds = array<i64: 256, 40>}, {pipeline_mode = #tpu.pipeline_mode<synchronous>, transform_indices = @transform_4, window_bounds = array<i64: 1, 40>}, {transform_indices = @transform_5, window_bounds = array<i64: 8, 40>}]} {
    %c0 = arith.constant 0 : index
    %c0_0 = arith.constant 0 : index
    %0 = vector.load %arg1[%c0, %c0_0] : memref<8x128xf32, #tpu.memory_space<vmem>>, vector<8x128xf32>
    %c0_1 = arith.constant 0 : index
    %c0_2 = arith.constant 0 : index
    %1 = vector.load %arg2[%c0_1, %c0_2] : memref<128x256xf32, #tpu.memory_space<vmem>>, vector<128x256xf32>
    %cst = arith.constant dense<0.000000e+00> : vector<8x256xf32>
    %2 = tpu.matmul %0, %1, %cst {dimension_numbers = #tpu.dot_dimension_numbers<[1], [0], [0], [1], [0, 0, 1, 1], [], []>} : vector<8x128xf32>, vector<128x256xf32>, vector<8x256xf32> -> vector<8x256xf32>
    %c0_3 = arith.constant 0 : index
    %c0_4 = arith.constant 0 : index
    %3 = vector.load %arg3[%c0_3, %c0_4] : memref<1x256xf32, #tpu.memory_space<vmem>>, vector<1x256xf32>
    %4 = vector.broadcast %3 : vector<1x256xf32> to vector<8x256xf32>
    %5 = arith.addf %2, %4 : vector<8x256xf32>
    %cst_5 = arith.constant 0.000000e+00 : f32
    %6 = vector.broadcast %cst_5 : f32 to vector<8x256xf32>
    %7 = arith.maximumf %5, %6 : vector<8x256xf32>
    %c0_6 = arith.constant 0 : index
    %c0_7 = arith.constant 0 : index
    %8 = vector.load %arg4[%c0_6, %c0_7] : memref<256x40xf32, #tpu.memory_space<vmem>>, vector<256x40xf32>
    %cst_8 = arith.constant dense<0.000000e+00> : vector<8x40xf32>
    %9 = tpu.matmul %7, %8, %cst_8 {dimension_numbers = #tpu.dot_dimension_numbers<[1], [0], [0], [1], [0, 0, 1, 1], [], []>} : vector<8x256xf32>, vector<256x40xf32>, vector<8x40xf32> -> vector<8x40xf32>
    %c0_9 = arith.constant 0 : index
    %c0_10 = arith.constant 0 : index
    %10 = vector.load %arg5[%c0_9, %c0_10] : memref<1x40xf32, #tpu.memory_space<vmem>>, vector<1x40xf32>
    %11 = vector.broadcast %10 : vector<1x40xf32> to vector<8x40xf32>
    %12 = arith.addf %9, %11 : vector<8x40xf32>
    %c0_11 = arith.constant 0 : index
    %c0_12 = arith.constant 0 : index
    %13 = vector.load %arg6[%c0_11, %c0_12] : memref<8x40xf32, #tpu.memory_space<vmem>>, vector<8x40xf32>
    tpu.vector_store %arg6[%c0_11, %c0_12], %12 {strides = array<i32>} : memref<8x40xf32, #tpu.memory_space<vmem>>, vector<8x40xf32>,
    return
  }
  func.func @transform_0(%arg0: i32) -> (i32, i32) {
    %c0_i32 = arith.constant 0 : i32
    %c0_i32_0 = arith.constant 0 : i32
    return %arg0, %c0_i32 : i32, i32
  }
  func.func @transform_1(%arg0: i32) -> (i32, i32) {
    %c0_i32 = arith.constant 0 : i32
    %c0_i32_0 = arith.constant 0 : i32
    %c0_i32_1 = arith.constant 0 : i32
    return %c0_i32, %c0_i32_0 : i32, i32
  }
  func.func @transform_2(%arg0: i32) -> (i32, i32) {
    %c0_i32 = arith.constant 0 : i32
    %c0_i32_0 = arith.constant 0 : i32
    %c0_i32_1 = arith.constant 0 : i32
    return %c0_i32, %c0_i32_0 : i32, i32
  }
  func.func @transform_3(%arg0: i32) -> (i32, i32) {
    %c0_i32 = arith.constant 0 : i32
    %c0_i32_0 = arith.constant 0 : i32
    %c0_i32_1 = arith.constant 0 : i32
    return %c0_i32, %c0_i32_0 : i32, i32
  }
  func.func @transform_4(%arg0: i32) -> (i32, i32) {
    %c0_i32 = arith.constant 0 : i32
    %c0_i32_0 = arith.constant 0 : i32
    %c0_i32_1 = arith.constant 0 : i32
    return %c0_i32, %c0_i32_0 : i32, i32
  }
  func.func @transform_5(%arg0: i32) -> (i32, i32) {
    %c0_i32 = arith.constant 0 : i32
    %c0_i32_0 = arith.constant 0 : i32
    return %arg0, %c0_i32 : i32, i32
  }
}

</mosaic_0001>

<llo_original>
// kernel: tpu_custom_call.1
$region0: #{tpu_custom_call.1}
  #allocation0 [shape = 'u32[]', space=smem, size = 0x4, offset = 0x4, fixed_abs, tag = 'smem constant byte address 0x4 - core index']
  #allocation1 [shape = 'u32[144,128]{1,0:T(1,128)}', space=vmem, size = 0x12000, scoped, tag = 'internal scratch']
  %s0 = inlined_call_operand.vmem [shape: f32[8,128], index: 0, kind: input, shape index: {}]
  %s1 = inlined_call_operand.vmem [shape: f32[128,256], index: 1, kind: input, shape index: {}]
  %s2 = inlined_call_operand.vmem [shape: f32[1,256], index: 2, kind: input, shape index: {}]
  %s3 = inlined_call_operand.vmem [shape: f32[256,40], index: 3, kind: input, shape index: {}]
  %s4 = inlined_call_operand.vmem [shape: f32[1,40], index: 4, kind: input, shape index: {}]
  %s5 = inlined_call_operand.hbm [shape: f32[8,40], index: 5, kind: output, shape index: {}]
  %s6 = sld [smem:[#allocation0]]
  $region30: #{tpu_custom_call.1} parent=0
    _
  %s8 = ssub.s32 1, %s6
  %s9 = scalar_select 0, %s8, %s6
  $region1: #{tpu_custom_call.1} parent=0
    #allocation2 [shape = 'u8[4096]{0}', space=vmem, size = 0x1000, scoped, tag = 'output window, operand 0, single buffered']
    #allocation3 [shape = 's32[1]{0}', space=sflag, size = 0x4, scoped, tag = 'scoped memory for tpu_custom_call.1']
    %10 = vsyncpa [#allocation3], 0
    // Predicated region
    $region2: #{tpu_custom_call.1} parent=1 // pred_check
      _
    $region3: #{tpu_custom_call.1} parent=1 // pred_check_branch
      %12 = sbr.rel (0) target = $region5
    $region4: #{tpu_custom_call.1} parent=1 // pred_region
      _
    $region5: #{tpu_custom_call.1} parent=1 // pred_fallthru
      _
    // Predicated region
    $region6: #{tpu_custom_call.1} parent=1 // pred_check
      _
    $region7: #{tpu_custom_call.1} parent=1 // pred_check_branch
      %14 = sbr.rel (0) target = $region9
    $region8: #{tpu_custom_call.1} parent=1 // pred_region
      _
    $region9: #{tpu_custom_call.1} parent=1 // pred_fallthru
      _
    // Predicated region
    $region10: #{tpu_custom_call.1} parent=1 // pred_check
      _
    $region11: #{tpu_custom_call.1} parent=1 // pred_check_branch
      %16 = sbr.rel (0) target = $region13
    $region12: #{tpu_custom_call.1} parent=1 // pred_region
      _
    $region13: #{tpu_custom_call.1} parent=1 // pred_fallthru
      _
    // Predicated region
    $region14: #{tpu_custom_call.1} parent=1 // pred_check
      _
    $region15: #{tpu_custom_call.1} parent=1 // pred_check_branch
      %18 = sbr.rel (0) target = $region17
    $region16: #{tpu_custom_call.1} parent=1 // pred_region
      _
    $region17: #{tpu_custom_call.1} parent=1 // pred_fallthru
      _
    // Predicated region
    $region18: #{tpu_custom_call.1} parent=1 // pred_check
      _
    $region19: #{tpu_custom_call.1} parent=1 // pred_check_branch
      %20 = sbr.rel (0) target = $region21
    $region20: #{tpu_custom_call.1} parent=1 // pred_region
      _
    $region21: #{tpu_custom_call.1} parent=1 // pred_fallthru
      _
    %v21 = vld [vmem:[%s0] sm:$0xff]
    %v22 = vld [vmem:[%s1] sm:$0xff]
    %v23 = vld [vmem:[%s1 + $0x8] sm:$0xff]
    %v24 = vld [vmem:[%s1 + $0x10] sm:$0xff]
    %v25 = vld [vmem:[%s1 + $0x18] sm:$0xff]
    %v26 = vld [vmem:[%s1 + $0x20] sm:$0xff]
    %v27 = vld [vmem:[%s1 + $0x28] sm:$0xff]
    %v28 = vld [vmem:[%s1 + $0x30] sm:$0xff]
    %v29 = vld [vmem:[%s1 + $0x38] sm:$0xff]
    %v30 = vld [vmem:[%s1 + $0x40] sm:$0xff]
    %v31 = vld [vmem:[%s1 + $0x48] sm:$0xff]
    %v32 = vld [vmem:[%s1 + $0x50] sm:$0xff]
    %v33 = vld [vmem:[%s1 + $0x58] sm:$0xff]
    %v34 = vld [vmem:[%s1 + $0x60] sm:$0xff]
    %v35 = vld [vmem:[%s1 + $0x68] sm:$0xff]
    %v36 = vld [vmem:[%s1 + $0x70] sm:$0xff]
    %v37 = vld [vmem:[%s1 + $0x78] sm:$0xff]
    %v38 = vld [vmem:[%s1 + $0x80] sm:$0xff]
    %v39 = vld [vmem:[%s1 + $0x88] sm:$0xff]
    %v40 = vld [vmem:[%s1 + $0x90] sm:$0xff]
    %v41 = vld [vmem:[%s1 + $0x98] sm:$0xff]
    %v42 = vld [vmem:[%s1 + $0xa0] sm:$0xff]
    %v43 = vld [vmem:[%s1 + $0xa8] sm:$0xff]
    %v44 = vld [vmem:[%s1 + $0xb0] sm:$0xff]
    %v45 = vld [vmem:[%s1 + $0xb8] sm:$0xff]
    %v46 = vld [vmem:[%s1 + $0xc0] sm:$0xff]
    %v47 = vld [vmem:[%s1 + $0xc8] sm:$0xff]
    %v48 = vld [vmem:[%s1 + $0xd0] sm:$0xff]
    %v49 = vld [vmem:[%s1 + $0xd8] sm:$0xff]
    %v50 = vld [vmem:[%s1 + $0xe0] sm:$0xff]
    %v51 = vld [vmem:[%s1 + $0xe8] sm:$0xff]
    %v52 = vld [vmem:[%s1 + $0xf0] sm:$0xff]
    %v53 = vld [vmem:[%s1 + $0xf8] sm:$0xff]
    %v54 = vld [vmem:[%s2] sm:$0x3]
    %v56 = vlaneseq
    %v57 = vshrl.u32 %v56, 7
    %v58 = vsub.s32 0, %v57
    %v59 = vrot.slane %v54, %v58
    %v60 = vlaneseq
    %v61 = vshrl.u32 %v60, 7
    %v62 = vsub.s32 1, %v61
    %v63 = vrot.slane %v54, %v62
    %66 = vmatprep.subr.mxu0 %v53
    %67 = vmatpush1.msra.mxu0 %v52
    %68 = vmatprep.subr.mxu0 %v51
    %69 = vmatpush1.msra.mxu0 %v50
    %70 = vmatprep.subr.mxu0 %v49
    %71 = vmatpush1.msra.mxu0 %v48
    %72 = vmatprep.subr.mxu0 %v47
    %73 = vmatpush1.msra.mxu0 %v46
    %74 = vmatprep.subr.mxu0 %v45
    %75 = vmatpush1.msra.mxu0 %v44
    %76 = vmatprep.subr.mxu0 %v43
    %77 = vmatpush1.msra.mxu0 %v42
    %78 = vmatprep.subr.mxu0 %v41
    %79 = vmatpush1.msra.mxu0 %v40
    %80 = vmatprep.subr.mxu0 %v39
    %81 = vmatpush1.msra.mxu0 %v38
    %82 = vmatprep.subr.mxu0 %v37
    %83 = vmatpush1.msra.mxu0 %v36
    %84 = vmatprep.subr.mxu0 %v35
    %85 = vmatpush1.msra.mxu0 %v34
    %86 = vmatprep.subr.mxu0 %v33
    %87 = vmatpush1.msra.mxu0 %v32
    %88 = vmatprep.subr.mxu0 %v31
    %89 = vmatpush1.msra.mxu0 %v30
    %90 = vmatprep.subr.mxu0 %v29
    %91 = vmatpush1.msra.mxu0 %v28
    %92 = vmatprep.subr.mxu0 %v27
    %93 = vmatpush1.msra.mxu0 %v26
    %94 = vmatprep.subr.mxu0 %v25
    %95 = vmatpush1.msra.mxu0 %v24
    %96 = vmatprep.subr.mxu0 %v23
    %97 = vmatpush1.msra.mxu0 %v22
    %98 = vmatprep.subr.mxu0 0.0
    %99 = vmatpush2.msra.mxu0 0.0
    %100 = vmatprep.subr.mxu0 0.0
    %101 = vmatpush2.msra.mxu0 0.0
    %102 = vmatprep.subr.mxu0 0.0
    %103 = vmatpush2.msra.mxu0 0.0
    %104 = vmatprep.subr.mxu0 0.0
    %105 = vmatpush2.msra.mxu0 0.0
    %106 = vmatprep.subr.mxu0 0.0
    %107 = vmatpush2.msra.mxu0 0.0
    %108 = vmatprep.subr.mxu0 0.0
    %109 = vmatpush2.msra.mxu0 0.0
    %110 = vmatprep.subr.mxu0 0.0
    %111 = vmatpush2.msra.mxu0 0.0
    %112 = vmatprep.subr.mxu0 0.0
    %113 = vmatpush2.msra.mxu0 0.0
    %114 = vmatprep.subr.mxu0 0.0
    %115 = vmatpush2.msra.mxu0 0.0
    %116 = vmatprep.subr.mxu0 0.0
    %117 = vmatpush2.msra.mxu0 0.0
    %118 = vmatprep.subr.mxu0 0.0
    %119 = vmatpush2.msra.mxu0 0.0
    %120 = vmatprep.subr.mxu0 0.0
    %121 = vmatpush2.msra.mxu0 0.0
    %122 = vmatprep.subr.mxu0 0.0
    %123 = vmatpush2.msra.mxu0 0.0
    %124 = vmatprep.subr.mxu0 0.0
    %125 = vmatpush2.msra.mxu0 0.0
    %126 = vmatprep.subr.mxu0 0.0
    %127 = vmatpush2.msra.mxu0 0.0
    %128 = vmatprep.subr.mxu0 0.0
    %129 = vmatpush2.msra.mxu0 0.0
    %130 = vmatprep.mubr.f32.mxu0 0.0
    %131 = vmatmul.mubr.f32.gmra.mxu0 %v21
    %v132 = vpop.f32.mrf.mxu0
    %v133 = vadd.f32 %v59, %v132
    %v134 = vpop.f32.mrf.mxu0
    %v135 = vadd.f32 %v63, %v134
    %136 = vdwg.mxu0
    %v137 = vmax.f32 %v133, 0.0
    %v138 = vmax.f32 %v135, 0.0
    %v139 = vld [vmem:[%s3] sm:$0xff]
    %v140 = vld [vmem:[%s3 + $0x8] sm:$0xff]
    %v141 = vld [vmem:[%s3 + $0x10] sm:$0xff]
    %v142 = vld [vmem:[%s3 + $0x18] sm:$0xff]
    %v143 = vld [vmem:[%s3 + $0x20] sm:$0xff]
    %v144 = vld [vmem:[%s3 + $0x28] sm:$0xff]
    %v145 = vld [vmem:[%s3 + $0x30] sm:$0xff]
    %v146 = vld [vmem:[%s3 + $0x38] sm:$0xff]
    %v147 = vld [vmem:[%s3 + $0x40] sm:$0xff]
    %v148 = vld [vmem:[%s3 + $0x48] sm:$0xff]
    %v149 = vld [vmem:[%s3 + $0x50] sm:$0xff]
    %v150 = vld [vmem:[%s3 + $0x58] sm:$0xff]
    %v151 = vld [vmem:[%s3 + $0x60] sm:$0xff]
    %v152 = vld [vmem:[%s3 + $0x68] sm:$0xff]
    %v153 = vld [vmem:[%s3 + $0x70] sm:$0xff]
    %v154 = vld [vmem:[%s3 + $0x78] sm:$0xff]
    %v155 = vld [vmem:[%s3 + $0x80] sm:$0xff]
    %v156 = vld [vmem:[%s3 + $0x88] sm:$0xff]
    %v157 = vld [vmem:[%s3 + $0x90] sm:$0xff]
    %v158 = vld [vmem:[%s3 + $0x98] sm:$0xff]
    %v159 = vld [vmem:[%s3 + $0xa0] sm:$0xff]
    %v160 = vld [vmem:[%s3 + $0xa8] sm:$0xff]
    %v161 = vld [vmem:[%s3 + $0xb0] sm:$0xff]
    %v162 = vld [vmem:[%s3 + $0xb8] sm:$0xff]
    %v163 = vld [vmem:[%s3 + $0xc0] sm:$0xff]
    %v164 = vld [vmem:[%s3 + $0xc8] sm:$0xff]
    %v165 = vld [vmem:[%s3 + $0xd0] sm:$0xff]
    %v166 = vld [vmem:[%s3 + $0xd8] sm:$0xff]
    %v167 = vld [vmem:[%s3 + $0xe0] sm:$0xff]
    %v168 = vld [vmem:[%s3 + $0xe8] sm:$0xff]
    %v169 = vld [vmem:[%s3 + $0xf0] sm:$0xff]
    %v170 = vld [vmem:[%s3 + $0xf8] sm:$0xff]
    %v171 = vld [vmem:[%s4] sm:$0x1]
    %v173 = vlaneseq
    %v174 = vshrl.u32 %v173, 7
    %v175 = vsub.s32 0, %v174
    %v176 = vrot.slane %v171, %v175
    %178 = vmatprep.subr.mxu0 0.0
    %179 = vmatpush1.msra.mxu0 %v154
    %180 = vmatprep.subr.mxu0 0.0
    %181 = vmatpush1.msra.mxu0 %v153
    %182 = vmatprep.subr.mxu0 0.0
    %183 = vmatpush1.msra.mxu0 %v152
    %184 = vmatprep.subr.mxu0 0.0
    %185 = vmatpush1.msra.mxu0 %v151
    %186 = vmatprep.subr.mxu0 0.0
    %187 = vmatpush1.msra.mxu0 %v150
    %188 = vmatprep.subr.mxu0 0.0
    %189 = vmatpush1.msra.mxu0 %v149
    %190 = vmatprep.subr.mxu0 0.0
    %191 = vmatpush1.msra.mxu0 %v148
    %192 = vmatprep.subr.mxu0 0.0
    %193 = vmatpush1.msra.mxu0 %v147
    %194 = vmatprep.subr.mxu0 0.0
    %195 = vmatpush1.msra.mxu0 %v146
    %196 = vmatprep.subr.mxu0 0.0
    %197 = vmatpush1.msra.mxu0 %v145
    %198 = vmatprep.subr.mxu0 0.0
    %199 = vmatpush1.msra.mxu0 %v144
    %200 = vmatprep.subr.mxu0 0.0
    %201 = vmatpush1.msra.mxu0 %v143
    %202 = vmatprep.subr.mxu0 0.0
    %203 = vmatpush1.msra.mxu0 %v142
    %204 = vmatprep.subr.mxu0 0.0
    %205 = vmatpush1.msra.mxu0 %v141
    %206 = vmatprep.subr.mxu0 0.0
    %207 = vmatpush1.msra.mxu0 %v140
    %208 = vmatprep.subr.mxu0 0.0
    %209 = vmatpush1.msra.mxu0 %v139
    %210 = vmatprep.subr.mxu0 0.0
    %211 = vmatpush2.msra.mxu0 %v170
    %212 = vmatprep.subr.mxu0 0.0
    %213 = vmatpush2.msra.mxu0 %v169
    %214 = vmatprep.subr.mxu0 0.0
    %215 = vmatpush2.msra.mxu0 %v168
    %216 = vmatprep.subr.mxu0 0.0
    %217 = vmatpush2.msra.mxu0 %v167
    %218 = vmatprep.subr.mxu0 0.0
    %219 = vmatpush2.msra.mxu0 %v166
    %220 = vmatprep.subr.mxu0 0.0
    %221 = vmatpush2.msra.mxu0 %v165
    %222 = vmatprep.subr.mxu0 0.0
    %223 = vmatpush2.msra.mxu0 %v164
    %224 = vmatprep.subr.mxu0 0.0
    %225 = vmatpush2.msra.mxu0 %v163
    %226 = vmatprep.subr.mxu0 0.0
    %227 = vmatpush2.msra.mxu0 %v162
    %228 = vmatprep.subr.mxu0 0.0
    %229 = vmatpush2.msra.mxu0 %v161
    %230 = vmatprep.subr.mxu0 0.0
    %231 = vmatpush2.msra.mxu0 %v160
    %232 = vmatprep.subr.mxu0 0.0
    %233 = vmatpush2.msra.mxu0 %v159
    %234 = vmatprep.subr.mxu0 0.0
    %235 = vmatpush2.msra.mxu0 %v158
    %236 = vmatprep.subr.mxu0 0.0
    %237 = vmatpush2.msra.mxu0 %v157
    %238 = vmatprep.subr.mxu0 0.0
    %239 = vmatpush2.msra.mxu0 %v156
    %240 = vmatprep.subr.mxu0 0.0
    %241 = vmatpush2.msra.mxu0 %v155
    %242 = vmatprep.mubr.f32.mxu0 %v138
    %243 = vmatmul.mubr.f32.gmra.mxu0 %v137
    %v244 = vpop.f32.mrf.mxu0
    %v245 = vadd.f32 %v176, %v244
    %v246 = vpop.f32.mrf.mxu0
    %247 = vdwg.mxu0
    %vm248 = vcmask 326656
    %249 = vst.msk [vmem:[#allocation2] sm:$0xff] %vm248, %v245
    // Predicated region
    $region22: #{tpu_custom_call.1} parent=1 // pred_check
      _
    $region23: #{tpu_custom_call.1} parent=1 // pred_check_branch
      %251 = sbr.rel (0) target = $region25
    $region24: #{tpu_custom_call.1} parent=1 // pred_region
      %s253 = ssub.s32 128, 128
      %254 = vsyncadd [#allocation3], %s253
      %s256 = sshll.u32 [#allocation2], 4
      %s257 = int_to_ptr.vmem [resolvable:$true] %s256
      %259 = dma.vmem_to_hbm [thread:$0]  %s257, 128, %s5, [#allocation3]
    $region25: #{tpu_custom_call.1} parent=1 // pred_fallthru
      _
    // Predicated region
    $region26: #{tpu_custom_call.1} parent=1 // pred_check
      _
    $region27: #{tpu_custom_call.1} parent=1 // pred_check_branch
      %261 = sbr.rel (0) target = $region29
    $region28: #{tpu_custom_call.1} parent=1 // pred_region
      %262 = dma.done [#allocation3], 128
    $region29: #{tpu_custom_call.1} parent=1 // pred_fallthru
      _
    %263 = vsyncpa [#allocation3], 1

</llo_original>
